<compile_context>
chip_gen: v7x
topology: tpu7x:2x2x1
jax: 0.10.0
libtpu: 0.0.40
codegen_flags: <defaults>
</compile_context>

<pallas_src>
import jax
import jax.numpy as jnp
from jax.experimental import pallas as pl
from jax.experimental.pallas import tpu as pltpu


def _round_up(a, b):
    return -(-a // b) * b


# -----------------------------------------------------------------------------
# Kernels
# -----------------------------------------------------------------------------
def _pooler_resident_kernel(x_ref, w_ref, b_ref, o_ref):
    """Weight (and bias) fully resident in VMEM; grid only over M.

    x_ref: (TM, K) activations tile, w_ref: (K, N) full weight,
    b_ref: (1, N) f32 bias, o_ref: (TM, N) output tile.
    Single MXU matmul with fused bias-add (VPU) + tanh (EUP) epilogue;
    no accumulator scratch, no per-K-step VMEM load/store traffic.
    """
    acc = jnp.dot(x_ref[...], w_ref[...], preferred_element_type=jnp.float32)
    o_ref[...] = jnp.tanh(acc + b_ref[...]).astype(o_ref.dtype)


def _pooler_tiled_kernel(x_ref, w_ref, b_ref, o_ref, acc_ref):
    """Fallback for weights too large to hold resident: K reduction axis with
    an f32 VMEM accumulator and a fused bias+tanh epilogue on the last step."""
    k = pl.program_id(2)

    @pl.when(k == 0)
    def _():
        acc_ref[...] = jnp.zeros_like(acc_ref)

    acc_ref[...] += jnp.dot(
        x_ref[...], w_ref[...], preferred_element_type=jnp.float32
    )

    @pl.when(k == pl.num_programs(2) - 1)
    def _():
        o_ref[...] = jnp.tanh(acc_ref[...] + b_ref[...]).astype(o_ref.dtype)


# -----------------------------------------------------------------------------
# Wrapper
# -----------------------------------------------------------------------------
def make_pooler(weight, bias, *, compute_dtype=None, tm_cap=512,
                max_resident_w_bytes=8 * 1024 * 1024):
    """Build a pooler apply(hidden_states) with the weight pre-transposed and
    pre-padded once (outside the per-call hot path).

    weight: (out_size, hidden) in PyTorch Linear layout.  bias: (out_size,).
    compute_dtype: MXU input dtype; defaults to weight.dtype (pass bf16
    parameters for the MXU-native path).
    """
    out_size, hidden = weight.shape
    if compute_dtype is None:
        compute_dtype = weight.dtype
    compute_dtype = jnp.dtype(compute_dtype)
    itemsize = compute_dtype.itemsize

    kp128 = _round_up(hidden, 128)
    np128 = _round_up(out_size, 128)
    resident = kp128 * np128 * itemsize <= max_resident_w_bytes

    if resident:
        kp, np_ = kp128, np128          # full K / N held in VMEM
        tk, tn = kp, np_
    else:
        tn = np128 if np128 <= 1024 else 512
        np_ = _round_up(out_size, tn)
        tk = kp128 if kp128 <= 512 else 512
        kp = _round_up(hidden, tk)

    # --- one-time parameter prep (hoisted out of the hot path) --------------
    w_t = weight.T.astype(compute_dtype)                       # (hidden, out)
    if (kp, np_) == (hidden, out_size):
        w_prep = w_t
    else:
        w_prep = jnp.zeros((kp, np_), compute_dtype).at[:hidden, :out_size].set(w_t)
    b_prep = jnp.zeros((1, np_), jnp.float32).at[:, :out_size].set(
        bias.astype(jnp.float32).reshape(1, out_size))

    @jax.jit
    def apply(hidden_states):
        orig_shape = hidden_states.shape
        assert orig_shape[-1] == hidden, "hidden size mismatch"
        m = 1
        for d in orig_shape[:-1]:
            m *= d

        x2d = hidden_states.reshape(m, hidden).astype(compute_dtype)

        # Pick TM so (a) padding stays within one sublane group and
        # (b) the parallel M axis has >= 2 blocks when possible (both v7x TCs).
        n_blocks = pl.cdiv(m, tm_cap)
        if m >= 16:
            n_blocks = max(n_blocks, 2)
        tm = _round_up(pl.cdiv(m, n_blocks), 8)
        mp = _round_up(m, tm)
        grid_m = mp // tm

        if mp != m or kp != hidden:
            x2d = jnp.pad(x2d, ((0, mp - m), (0, kp - hidden)))

        if resident:
            # double-buffered x/out tiles + resident W + bias, with headroom
            est = (2 * tm * kp * itemsize + 2 * kp * np_ * itemsize
                   + 2 * tm * np_ * itemsize + np_ * 4)
            vmem_limit = min(64 * 1024 * 1024, max(2 * est, 16 * 1024 * 1024))
            out = pl.pallas_call(
                _pooler_resident_kernel,
                out_shape=jax.ShapeDtypeStruct((mp, np_), compute_dtype),
                grid_spec=pltpu.PrefetchScalarGridSpec(
                    num_scalar_prefetch=0,
                    grid=(grid_m,),
                    in_specs=[
                        pl.BlockSpec((tm, kp), lambda i: (i, 0)),    # x tile
                        pl.BlockSpec((kp, np_), lambda i: (0, 0)),   # resident W
                        pl.BlockSpec((1, np_), lambda i: (0, 0)),    # resident bias
                    ],
                    out_specs=pl.BlockSpec((tm, np_), lambda i: (i, 0)),
                ),
                compiler_params=pltpu.CompilerParams(
                    dimension_semantics=("parallel",),
                    vmem_limit_bytes=vmem_limit,
                ),
            )(x2d, w_prep, b_prep)
        else:
            grid = (grid_m, np_ // tn, kp // tk)
            est = (2 * tm * tk * itemsize + 2 * tk * tn * itemsize
                   + 2 * tm * tn * itemsize + tm * tn * 4 + tn * 4)
            vmem_limit = min(64 * 1024 * 1024, max(2 * est, 16 * 1024 * 1024))
            out = pl.pallas_call(
                _pooler_tiled_kernel,
                out_shape=jax.ShapeDtypeStruct((mp, np_), compute_dtype),
                grid_spec=pltpu.PrefetchScalarGridSpec(
                    num_scalar_prefetch=0,
                    grid=grid,
                    in_specs=[
                        pl.BlockSpec((tm, tk), lambda i, j, k: (i, k)),   # x
                        pl.BlockSpec((tk, tn), lambda i, j, k: (k, j)),   # W
                        pl.BlockSpec((1, tn), lambda i, j, k: (0, j)),    # bias
                    ],
                    out_specs=pl.BlockSpec((tm, tn), lambda i, j, k: (i, j)),
                    scratch_shapes=[pltpu.VMEM((tm, tn), jnp.float32)],
                ),
                compiler_params=pltpu.CompilerParams(
                    dimension_semantics=("parallel", "parallel", "arbitrary"),
                    vmem_limit_bytes=vmem_limit,
                ),
            )(x2d, w_prep, b_prep)

        out = out[:m, :out_size]
        return out.reshape(*orig_shape[:-1], out_size)

    return apply


if __name__ == "__main__":
    key = jax.random.PRNGKey(0)
    k_x, k_w, k_b = jax.random.split(key, 3)

    # Small shapes consistent with the module: hidden_states (batch, seq, hidden).
    BATCH, SEQ, HIDDEN, OUT = 2, 8, 32, 32
    x_f32 = jax.random.normal(k_x, (BATCH, SEQ, HIDDEN), dtype=jnp.float32)
    w_f32 = jax.random.normal(k_w, (OUT, HIDDEN), dtype=jnp.float32) * 0.02
    b_f32 = jax.random.normal(k_b, (OUT,), dtype=jnp.float32) * 0.02

    # --- Path 1: bf16 (MXU-native), weight resident in VMEM -----------------
    x_bf16 = x_f32.astype(jnp.bfloat16)
    w_bf16 = w_f32.astype(jnp.bfloat16)
    b_bf16 = b_f32.astype(jnp.bfloat16)
    pooler_bf16 = make_pooler(w_bf16, b_bf16)
    out_bf16 = jax.block_until_ready(pooler_bf16(x_bf16))

    ref_bf16 = jnp.tanh(
        jnp.einsum("bsh,oh->bso",
                   x_bf16.astype(jnp.float32), w_bf16.astype(jnp.float32))
        + b_bf16.astype(jnp.float32))
    assert out_bf16.shape == (BATCH, SEQ, OUT), out_bf16.shape
    assert out_bf16.dtype == jnp.bfloat16, out_bf16.dtype
    assert jnp.allclose(out_bf16.astype(jnp.float32), ref_bf16,
                        atol=1e-2, rtol=1e-2), "bf16 path mismatch vs reference"

    # --- Path 2: f32, forced tiled-K fallback (exercises the accumulator) ---
    pooler_f32 = make_pooler(w_f32, b_f32, max_resident_w_bytes=0)
    out_f32 = jax.block_until_ready(pooler_f32(x_f32))
    ref_f32 = jnp.tanh(jnp.einsum("bsh,oh->bso", x_f32, w_f32) + b_f32)
    assert out_f32.shape == (BATCH, SEQ, OUT), out_f32.shape
    assert jnp.allclose(out_f32, ref_f32, atol=1e-4, rtol=1e-4), \
        "f32 tiled path mismatch vs reference"

    print("KERNEL_OK")
</pallas_src>

<mosaic_0001>
module attributes {stable_mosaic.version = 11 : i64} {
  func.func @_pooler_resident_kernel(%arg0: i32, %arg1: memref<8x128xbf16, #tpu.memory_space<vmem>>, %arg2: memref<128x128xbf16, #tpu.memory_space<vmem>>, %arg3: memref<1x128xf32, #tpu.memory_space<vmem>>, %arg4: memref<8x128xbf16, #tpu.memory_space<vmem>>) attributes {dimension_semantics = [#tpu.dimension_semantics<parallel>], iteration_bounds = array<i64: 2>, scalar_prefetch = 0 : i64, scratch_operands = 0 : i64, tpu.core_type = #tpu.core_type<tc>, window_params = [{transform_indices = @transform_0, window_bounds = array<i64: 8, 128>}, {pipeline_mode = #tpu.pipeline_mode<synchronous>, transform_indices = @transform_1, window_bounds = array<i64: 128, 128>}, {pipeline_mode = #tpu.pipeline_mode<synchronous>, transform_indices = @transform_2, window_bounds = array<i64: 1, 128>}, {transform_indices = @transform_3, window_bounds = array<i64: 8, 128>}]} {
    %c0 = arith.constant 0 : index
    %c0_0 = arith.constant 0 : index
    %0 = vector.load %arg1[%c0, %c0_0] : memref<8x128xbf16, #tpu.memory_space<vmem>>, vector<8x128xbf16>
    %c0_1 = arith.constant 0 : index
    %c0_2 = arith.constant 0 : index
    %1 = vector.load %arg2[%c0_1, %c0_2] : memref<128x128xbf16, #tpu.memory_space<vmem>>, vector<128x128xbf16>
    %cst = arith.constant dense<0.000000e+00> : vector<8x128xf32>
    %2 = tpu.matmul %0, %1, %cst {dimension_numbers = #tpu.dot_dimension_numbers<[1], [0], [0], [1], [0, 0, 1, 1], [], []>} : vector<8x128xbf16>, vector<128x128xbf16>, vector<8x128xf32> -> vector<8x128xf32>
    %c0_3 = arith.constant 0 : index
    %c0_4 = arith.constant 0 : index
    %3 = vector.load %arg3[%c0_3, %c0_4] : memref<1x128xf32, #tpu.memory_space<vmem>>, vector<1x128xf32>
    %4 = vector.broadcast %3 : vector<1x128xf32> to vector<8x128xf32>
    %5 = arith.addf %2, %4 : vector<8x128xf32>
    %6 = math.tanh %5 : vector<8x128xf32>
    %7 = arith.truncf %6 : vector<8x128xf32> to vector<8x128xbf16>
    %c0_5 = arith.constant 0 : index
    %c0_6 = arith.constant 0 : index
    %8 = vector.load %arg4[%c0_5, %c0_6] : memref<8x128xbf16, #tpu.memory_space<vmem>>, vector<8x128xbf16>
    tpu.vector_store %arg4[%c0_5, %c0_6], %7 {strides = array<i32>} : memref<8x128xbf16, #tpu.memory_space<vmem>>, vector<8x128xbf16>,
    return
  }
  func.func @transform_0(%arg0: i32) -> (i32, i32) {
    %c0_i32 = arith.constant 0 : i32
    %c0_i32_0 = arith.constant 0 : i32
    return %arg0, %c0_i32 : i32, i32
  }
  func.func @transform_1(%arg0: i32) -> (i32, i32) {
    %c0_i32 = arith.constant 0 : i32
    %c0_i32_0 = arith.constant 0 : i32
    %c0_i32_1 = arith.constant 0 : i32
    return %c0_i32, %c0_i32_0 : i32, i32
  }
  func.func @transform_2(%arg0: i32) -> (i32, i32) {
    %c0_i32 = arith.constant 0 : i32
    %c0_i32_0 = arith.constant 0 : i32
    %c0_i32_1 = arith.constant 0 : i32
    return %c0_i32, %c0_i32_0 : i32, i32
  }
  func.func @transform_3(%arg0: i32) -> (i32, i32) {
    %c0_i32 = arith.constant 0 : i32
    %c0_i32_0 = arith.constant 0 : i32
    return %arg0, %c0_i32 : i32, i32
  }
}

</mosaic_0001>

<llo_original>
// kernel: apply.1
$region0: #{apply.1}
  #allocation0 [shape = 'u32[]', space=smem, size = 0x4, offset = 0x4, fixed_abs, tag = 'smem constant byte address 0x4 - core index']
  #allocation1 [shape = 'u32[144,128]{1,0:T(1,128)}', space=vmem, size = 0x12000, scoped, tag = 'internal scratch']
  %s0 = inlined_call_operand.vmem [shape: bf16[16,128], index: 0, kind: input, shape index: {}]
  %s1 = inlined_call_operand.hbm [shape: bf16[128,128], index: 1, kind: input, shape index: {}]
  %s2 = inlined_call_operand.vmem [shape: f32[1,128], index: 2, kind: input, shape index: {}]
  %s3 = inlined_call_operand.vmem [shape: bf16[16,128], index: 3, kind: output, shape index: {}]
  %s4 = sld [smem:[#allocation0]]
  $region49: #{apply.1} parent=0
    _
  %s6 = ssub.s32 1, %s4
  %s7 = scalar_select 0, %s6, %s4
  $region1: #{apply.1} parent=0
    #allocation2 [shape = 'u8[32768]{0}', space=vmem, size = 0x8000, scoped, tag = 'input window, operand 1, single buffered']
    #allocation3 [shape = 's32[2]{0}', space=sflag, size = 0x8, scoped, tag = 'scoped memory for apply.1']
    %8 = vsyncpa [#allocation3], 0
    loop: start=0, step=1, limit=4
    $region2: #{apply.1} parent=1 // loop_pre_header
      _
    $region3: #{apply.1} parent=1 // loop_header
      %s10 = sphi 0, %s14
      %p11 = scmp.ge.s32.totalorder %s10, 4
      %s20 = sphi 0, %s22
      %s23 = sphi 0, %s20
      %s24 = sphi 0, %s23
      %s40 = sphi 0, %s24
      %s44 = sphi 0, %s44
      %s46 = sphi 0, %s44
      %s47 = sphi 0, %s46
      %s61 = sphi 0, %s47
      %s65 = sphi 0, %s65
      %s67 = sphi 0, %s65
      %s68 = sphi 0, %s67
      %s82 = sphi 0, %s68
      %s88 = sphi 0, %s90
      %s91 = sphi 0, %s88
      %s92 = sphi 0, %s91
      %s108 = sphi 0, %s92
    $region4: #{apply.1} parent=1 // loop_header_branch
      %13 = sbr.rel (%p11) target = $region8
    $region5: #{apply.1} parent=1 // loop_body
      %s15 = ssub.s32 %s10, 1
      %s16 = ssub.s32 %s10, 2
      %s17 = sadd.s32 %s10, 1
      %s18 = ssub.s32 %s10, %s17
      %p19 = scmp.eq.s32.totalorder %s18, 0
      %s21 = sadd.s32 %s20, 1
      %s22 = scalar_select %p19, %s20, %s21
      %p25 = pneg %p19
      %p26 = scmp.eq.s32.totalorder %s10, 1
      %p27 = por %p25, %p26
      %p28 = scmp.ne.s32.totalorder %s20, %s23
      %p29 = scmp.eq.s32.totalorder %s10, 0
      %p30 = por %p28, %p29
      %p31 = scmp.ne.s32.totalorder %s20, %s23
      %p32 = scmp.eq.s32.totalorder %s15, 1
      %p33 = por %p31, %p32
      %p34 = scmp.ne.s32.totalorder %s23, %s24
      %p35 = scmp.eq.s32.totalorder %s15, 0
      %p36 = por %p34, %p35
      %p37 = scmp.ne.s32.totalorder %s23, %s24
      %p38 = scmp.eq.s32.totalorder %s16, 1
      %p39 = por %p37, %p38
      %p41 = scmp.ne.s32.totalorder %s24, %s40
      %p42 = scmp.eq.s32.totalorder %s16, 0
      %p43 = por %p41, %p42
      %s45 = sadd.s32 %s44, 1
      %p48 = scmp.eq.s32.totalorder %s10, 1
      %p49 = scmp.ne.s32.totalorder %s44, %s46
      %p50 = scmp.eq.s32.totalorder %s10, 0
      %p51 = por %p49, %p50
      %p52 = scmp.ne.s32.totalorder %s44, %s46
      %p53 = scmp.eq.s32.totalorder %s15, 1
      %p54 = por %p52, %p53
      %p55 = scmp.ne.s32.totalorder %s46, %s47
      %p56 = scmp.eq.s32.totalorder %s15, 0
      %p57 = por %p55, %p56
      %p58 = scmp.ne.s32.totalorder %s46, %s47
      %p59 = scmp.eq.s32.totalorder %s16, 1
      %p60 = por %p58, %p59
      %p62 = scmp.ne.s32.totalorder %s47, %s61
      %p63 = scmp.eq.s32.totalorder %s16, 0
      %p64 = por %p62, %p63
      %s66 = sadd.s32 %s65, 1
      %p69 = scmp.eq.s32.totalorder %s10, 1
      %p70 = scmp.ne.s32.totalorder %s65, %s67
      %p71 = scmp.eq.s32.totalorder %s10, 0
      %p72 = por %p70, %p71
      %p73 = scmp.ne.s32.totalorder %s65, %s67
      %p74 = scmp.eq.s32.totalorder %s15, 1
      %p75 = por %p73, %p74
      %p76 = scmp.ne.s32.totalorder %s67, %s68
      %p77 = scmp.eq.s32.totalorder %s15, 0
      %p78 = por %p76, %p77
      %p79 = scmp.ne.s32.totalorder %s67, %s68
      %p80 = scmp.eq.s32.totalorder %s16, 1
      %p81 = por %p79, %p80
      %p83 = scmp.ne.s32.totalorder %s68, %s82
      %p84 = scmp.eq.s32.totalorder %s16, 0
      %p85 = por %p83, %p84
      %s86 = ssub.s32 %s10, %s17
      %p87 = scmp.eq.s32.totalorder %s86, 0
      %s89 = sadd.s32 %s88, 1
      %s90 = scalar_select %p87, %s88, %s89
      %p93 = pneg %p87
      %p94 = scmp.eq.s32.totalorder %s10, 1
      %p95 = por %p93, %p94
      %p96 = scmp.ne.s32.totalorder %s88, %s91
      %p97 = scmp.eq.s32.totalorder %s10, 0
      %p98 = por %p96, %p97
      %p99 = scmp.ne.s32.totalorder %s88, %s91
      %p100 = scmp.eq.s32.totalorder %s15, 1
      %p101 = por %p99, %p100
      %p102 = scmp.ne.s32.totalorder %s91, %s92
      %p103 = scmp.eq.s32.totalorder %s15, 0
      %p104 = por %p102, %p103
      %p105 = scmp.ne.s32.totalorder %s91, %s92
      %p106 = scmp.eq.s32.totalorder %s16, 1
      %p107 = por %p105, %p106
      %p109 = scmp.ne.s32.totalorder %s92, %s108
      %p110 = scmp.eq.s32.totalorder %s16, 0
      %p111 = por %p109, %p110
      %p112 = scmp.le.s32.totalorder 1, %s10
      %p113 = scmp.lt.s32.totalorder %s10, 3
      %p114 = pnand %p112, %p113
      %p115 = pneg %p114
      // Predicated region
      $region9: #{apply.1} parent=5 // pred_check
        _
      $region10: #{apply.1} parent=5 // pred_check_branch
        %117 = sbr.rel (%p114) target = $region12
      $region11: #{apply.1} parent=5 // pred_region
        %s118 = ssub.s32 %s10, 1
        // Predicated region
        $region13: #{apply.1} parent=11 // pred_check
          %p119 = pneg %p57
        $region14: #{apply.1} parent=11 // pred_check_branch
          %121 = sbr.rel (%p119) target = $region16
        $region15: #{apply.1} parent=11 // pred_region
          %s123 = ssub.s32 1024, 1024
          %124 = vsyncadd [#allocation3], %s123
          %s125 = sshll.u32 [#allocation2], 4
          %s126 = int_to_ptr.vmem [resolvable:$true] %s125
          %131 = dma.hbm_to_vmem [thread:$0]  %s1, 1024, %s126, [#allocation3], 64, 64, 4
        $region16: #{apply.1} parent=11 // pred_fallthru
          _
        // Predicated region
        $region17: #{apply.1} parent=11 // pred_check
          %p132 = pneg %p78
        $region18: #{apply.1} parent=11 // pred_check_branch
          %134 = sbr.rel (%p132) target = $region20
        $region19: #{apply.1} parent=11 // pred_region
          _
        $region20: #{apply.1} parent=11 // pred_fallthru
          _
      $region12: #{apply.1} parent=5 // pred_fallthru
        _
      %p135 = scmp.lt.s32.totalorder %s10, 2
      // Predicated region
      $region21: #{apply.1} parent=5 // pred_check
        %p136 = pneg %p135
      $region22: #{apply.1} parent=5 // pred_check_branch
        %138 = sbr.rel (%p136) target = $region24
      $region23: #{apply.1} parent=5 // pred_region
        // Predicated region
        $region25: #{apply.1} parent=23 // pred_check
          %p139 = pneg %p30
        $region26: #{apply.1} parent=23 // pred_check_branch
          %141 = sbr.rel (%p139) target = $region28
        $region27: #{apply.1} parent=23 // pred_region
          %p142 = scmp.lt.s32.totalorder %s10, 1
          %s143 = scalar_select %p142, %s10, 1
          %s144 = smul.addr %s143, 4
          %s145 = scalar_lea.vmem %s0, %s144
        $region28: #{apply.1} parent=23 // pred_fallthru
          _
      $region24: #{apply.1} parent=5 // pred_fallthru
        _
      %p146 = scmp.le.s32.totalorder 1, %s10
      %p147 = scmp.lt.s32.totalorder %s10, 3
      %p148 = pnand %p146, %p147
      %p149 = pneg %p148
      // Predicated region
      $region29: #{apply.1} parent=5 // pred_check
        _
      $region30: #{apply.1} parent=5 // pred_check_branch
        %151 = sbr.rel (%p148) target = $region32
      $region31: #{apply.1} parent=5 // pred_region
        %s152 = ssub.s32 %s10, 1
        // Predicated region
        $region33: #{apply.1} parent=31 // pred_check
          %p153 = pneg %p57
        $region34: #{apply.1} parent=31 // pred_check_branch
          %155 = sbr.rel (%p153) target = $region36
        $region35: #{apply.1} parent=31 // pred_region
          %156 = dma.done [#allocation3], 1024
        $region36: #{apply.1} parent=31 // pred_fallthru
          _
        %p157 = scmp.lt.s32.totalorder %s15, 1
        %s158 = scalar_select %p157, %s15, 1
        %s159 = smul.addr %s158, 4
        %s160 = scalar_lea.vmem %s0, %s159
        %p161 = pneg %p36
        %p162 = pneg %p33
        %p163 = pneg %p57
        %p164 = pneg %p54
        %p165 = pneg %p78
        %p166 = pneg %p75
        %p167 = pneg %p104
        %p168 = pneg %p101
        %p169 = scmp.lt.s32.totalorder %s15, 1
        %s170 = scalar_select %p169, %s15, 1
        %s171 = smul.addr %s170, 4
        %s172 = scalar_lea.vmem %s3, %s171
        %p173 = scmp.lt.s32.totalorder %s15, 1
        %s174 = scalar_select %p173, %s15, 1
        %s175 = smul.addr %s174, 4
        %s176 = scalar_lea.vmem %s0, %s175
        %p177 = scmp.lt.s32.totalorder %s15, 1
        %s178 = scalar_select %p177, %s15, 1
        %s179 = smul.addr %s178, 4
        %s180 = scalar_lea.vmem %s3, %s179
        %v182 = vld [vmem:[%s176] sm:$0xf]
        %v183 = vld [vmem:[#allocation2] sm:$0xf]
        %v184 = vld [vmem:[#allocation2 + $0x4] sm:$0xf]
        %v185 = vld [vmem:[#allocation2 + $0x8] sm:$0xf]
        %v186 = vld [vmem:[#allocation2 + $0xc] sm:$0xf]
        %v187 = vld [vmem:[#allocation2 + $0x10] sm:$0xf]
        %v188 = vld [vmem:[#allocation2 + $0x14] sm:$0xf]
        %v189 = vld [vmem:[#allocation2 + $0x18] sm:$0xf]
        %v190 = vld [vmem:[#allocation2 + $0x1c] sm:$0xf]
        %v191 = vld [vmem:[#allocation2 + $0x20] sm:$0xf]
        %v192 = vld [vmem:[#allocation2 + $0x24] sm:$0xf]
        %v193 = vld [vmem:[#allocation2 + $0x28] sm:$0xf]
        %v194 = vld [vmem:[#allocation2 + $0x2c] sm:$0xf]
        %v195 = vld [vmem:[#allocation2 + $0x30] sm:$0xf]
        %v196 = vld [vmem:[#allocation2 + $0x34] sm:$0xf]
        %v197 = vld [vmem:[#allocation2 + $0x38] sm:$0xf]
        %v198 = vld [vmem:[#allocation2 + $0x3c] sm:$0xf]
        %v199 = vld [vmem:[%s2] sm:$0x1]
        %v201 = vlaneseq
        %v202 = vshrl.u32 %v201, 7
        %v203 = vsub.s32 0, %v202
        %v204 = vrot.slane %v199, %v203
        %v222 = vunpack.c.l.b16 %v183
        %v223 = vunpack.c.l.b16 %v184
        %v224 = vunpack.c.l.b16 %v185
        %v225 = vunpack.c.l.b16 %v186
        %v226 = vunpack.c.l.b16 %v187
        %v227 = vunpack.c.l.b16 %v188
        %v228 = vunpack.c.l.b16 %v189
        %v229 = vunpack.c.l.b16 %v190
        %v230 = vunpack.c.l.b16 %v191
        %v231 = vunpack.c.l.b16 %v192
        %v232 = vunpack.c.l.b16 %v193
        %v233 = vunpack.c.l.b16 %v194
        %v234 = vunpack.c.l.b16 %v195
        %v235 = vunpack.c.l.b16 %v196
        %v236 = vunpack.c.l.b16 %v197
        %v237 = vunpack.c.l.b16 %v198
        %v238 = vpack.c.b16 %v223, %v222
        %v239 = vpack.c.b16 %v225, %v224
        %v240 = vpack.c.b16 %v227, %v226
        %v241 = vpack.c.b16 %v229, %v228
        %v242 = vpack.c.b16 %v231, %v230
        %v243 = vpack.c.b16 %v233, %v232
        %v244 = vpack.c.b16 %v235, %v234
        %v245 = vpack.c.b16 %v237, %v236
        %254 = vmatprep.subr.bf16.mxu0 0
        %255 = vmatpush1.bf16.msra.mxu0 %v238
        %256 = vmatprep.subr.bf16.mxu0 0
        %257 = vmatpush1.bf16.msra.mxu0 %v239
        %258 = vmatprep.subr.bf16.mxu0 0
        %259 = vmatpush1.bf16.msra.mxu0 %v240
        %260 = vmatprep.subr.bf16.mxu0 0
        %261 = vmatpush1.bf16.msra.mxu0 %v241
        %262 = vmatprep.subr.bf16.mxu0 0
        %263 = vmatpush1.bf16.msra.mxu0 %v242
        %264 = vmatprep.subr.bf16.mxu0 0
        %265 = vmatpush1.bf16.msra.mxu0 %v243
        %266 = vmatprep.subr.bf16.mxu0 0
        %267 = vmatpush1.bf16.msra.mxu0 %v244
        %268 = vmatprep.subr.bf16.mxu0 0
        %269 = vmatpush1.bf16.msra.mxu0 %v245
        %270 = vmatprep.subr.bf16.mxu0 0
        %271 = vmatpush1.bf16.msra.mxu0 0
        %272 = vmatprep.subr.bf16.mxu0 0
        %273 = vmatpush1.bf16.msra.mxu0 0
        %274 = vmatprep.subr.bf16.mxu0 0
        %275 = vmatpush1.bf16.msra.mxu0 0
        %276 = vmatprep.subr.bf16.mxu0 0
        %277 = vmatpush1.bf16.msra.mxu0 0
        %278 = vmatprep.subr.bf16.mxu0 0
        %279 = vmatpush1.bf16.msra.mxu0 0
        %280 = vmatprep.subr.bf16.mxu0 0
        %281 = vmatpush1.bf16.msra.mxu0 0
        %282 = vmatprep.subr.bf16.mxu0 0
        %283 = vmatpush1.bf16.msra.mxu0 0
        %284 = vmatprep.subr.bf16.mxu0 0
        %285 = vmatpush1.bf16.msra.mxu0 0
        %286 = vmatprep.mubr.bf16.mxu0 0
        %287 = vmatmul.mubr.bf16.gmra.mrb[0].mxu0 %v182
        %v288 = vpop.f32.mrb[0].mxu0
        %v289 = vadd.f32 %v204, %v288
        %v290 = vpop.f32.mrb[0].mxu0
        %v291 = vpop.f32.mrb[0].mxu0
        %v292 = vpop.f32.mrb[0].mxu0
        %293 = vdwg.mxu0
        %v294 = vtanh.pop %v289
        %v295 = vpack.c.bf16 %v294, %v294
        %296 = vst [vmem:[%s180] sm:$0xf] %v295
        %p297 = scmp.lt.s32.totalorder %s15, 1
        %s298 = scalar_select %p297, %s15, 1
        %s299 = smul.addr %s298, 4
        %s300 = scalar_lea.vmem %s3, %s299
        // Predicated region
        $region37: #{apply.1} parent=31 // pred_check
          %p301 = pneg %p101
        $region38: #{apply.1} parent=31 // pred_check_branch
          %303 = sbr.rel (%p301) target = $region40
        $region39: #{apply.1} parent=31 // pred_region
          _
        $region40: #{apply.1} parent=31 // pred_fallthru
          _
      $region32: #{apply.1} parent=5 // pred_fallthru
        _
      %p304 = scmp.le.s32.totalorder 2, %s10
      // Predicated region
      $region41: #{apply.1} parent=5 // pred_check
        %p305 = pneg %p304
      $region42: #{apply.1} parent=5 // pred_check_branch
        %307 = sbr.rel (%p305) target = $region44
      $region43: #{apply.1} parent=5 // pred_region
        %s308 = ssub.s32 %s10, 2
        // Predicated region
        $region45: #{apply.1} parent=43 // pred_check
          %p309 = pneg %p107
        $region46: #{apply.1} parent=43 // pred_check_branch
          %311 = sbr.rel (%p309) target = $region48
        $region47: #{apply.1} parent=43 // pred_region
          %p312 = scmp.lt.s32.totalorder %s16, 1
          %s313 = scalar_select %p312, %s16, 1
          %s314 = smul.addr %s313, 4
          %s315 = scalar_lea.vmem %s3, %s314
        $region48: #{apply.1} parent=43 // pred_fallthru
          _
      $region44: #{apply.1} parent=5 // pred_fallthru
        _
    $region6: #{apply.1} parent=1 // loop_footer
      %s14 = sadd.s32 1, %s10
    $region7: #{apply.1} parent=1 // loop_footer_branch
      %9 = sbr.rel target = $region3
    $region8: #{apply.1} parent=1 // loop_exit
      _
    %316 = vsyncpa [#allocation3], 1
    %s317 = scalar_lea.sflag [#allocation3], 1
    %318 = vsyncpa %s317, 1

</llo_original>
